<compile_context>
chip_gen: v6e
topology: v6e:2x2x1
jax: 0.10.0
libtpu: 0.0.40
codegen_flags: <defaults>
</compile_context>

<pallas_src>
import numpy as np
import jax
import jax.numpy as jnp
from jax.experimental import pallas as pl
from jax.experimental.pallas import tpu as pltpu


# ---------------------------------------------------------------------------
# Small helpers
# ---------------------------------------------------------------------------
def _round_up(v, m):
    return ((v + m - 1) // m) * m


def _vmem_budget_bytes():
    """~75% of physical VMEM of the current TPU generation (v5e/v6e: 128 MiB,
    v7x: 64 MiB).  Falls back to the smallest (v7x) if the query fails."""
    try:
        cap = int(pltpu.get_tpu_info().vmem_capacity_bytes)
    except Exception:
        cap = 64 * 1024 * 1024
    return (cap * 3) // 4


def _pick_g_tile(g_pad, rx, n, k_dim, d_bytes, x_bytes, budget):
    """Largest 128-multiple lane tile that fits the VMEM budget.

    Accounts for: both D matrices (conservatively 2 buffers each), the
    double-buffered input block, the two double-buffered f32 output planes and
    the live MXU result temporaries.
    """
    d_vmem = 2 * 2 * n * k_dim * d_bytes
    tile = 128
    for cand in (2048, 1024, 512, 256, 128):
        if g_pad % cand:
            continue
        per_tile = (2 * k_dim * cand * x_bytes      # input block, 2 buffers
                    + 2 * 2 * n * cand * 4          # two f32 output planes, 2 buffers
                    + 2 * n * cand * 4)             # live MXU result temporaries
        if d_vmem + per_tile <= budget:
            tile = cand
            break
    # v7x megacore balance: keep >= 2 grid steps so both TensorCores get work.
    while tile > 128 and rx * (g_pad // tile) < 2:
        tile //= 2
    return tile


# ---------------------------------------------------------------------------
# Host-side precompute: window + pad/truncate + fftshift folded into DFT mats
# ---------------------------------------------------------------------------
def _make_dft_mats(n, m_len, m_used, window, dtype, complex_input):
    """Return two [n, K] matrices (K = 2*m_used for complex input, m_used for
    real input) such that

        Y_re = D_a @ Xblk ,  Y_im = D_b @ Xblk

    reproduces fftshift(fft(window * X, n, axis=slow), axis=slow)."""
    if window is None:
        w = np.ones((m_len,), np.float64)
    else:
        w = np.asarray(window, np.float64).reshape(-1)
        if w.shape[0] == 1:
            w = np.full((m_len,), float(w[0]), np.float64)
        elif w.shape[0] != m_len:
            raise ValueError(f"window length {w.shape[0]} must be 1 or M={m_len}")

    # torch.fft.fft(X, n, dim) with n < M uses only the FIRST n samples.
    k_eff = min(n, m_len)
    k = np.arange(n)[:, None]
    m = np.arange(m_used)[None, :]
    ang = -2.0 * np.pi * (k * m) / n                      # e^{-2*pi*i*k*m/n}
    col = (m < k_eff).astype(np.float64) * w[None, :m_used]
    dre = np.cos(ang) * col
    dim_ = np.sin(ang) * col

    # fftshift along the output-bin axis == np.roll(D, n//2, axis=0)
    # (matches torch.fft.fftshift for odd n too).
    dre = np.roll(dre, n // 2, axis=0)
    dim_ = np.roll(dim_, n // 2, axis=0)

    if complex_input:
        d_a = np.concatenate([dre, -dim_], axis=1)   # -> Re(Y)
        d_b = np.concatenate([dim_, dre], axis=1)    # -> Im(Y)
    else:
        d_a, d_b = dre, dim_
    return jnp.asarray(d_a, dtype), jnp.asarray(d_b, dtype)


# ---------------------------------------------------------------------------
# Kernel: two MXU matmuls per tile, f32 accumulation, lane-dense stores
# ---------------------------------------------------------------------------
def _doppler_dft_kernel(d_re_ref, d_im_ref, x_ref, y_re_ref, y_im_ref):
    x = x_ref[...].astype(d_re_ref.dtype)   # no-op on the (pre-cast) complex path
    y_re_ref[...] = jnp.dot(d_re_ref[...], x, preferred_element_type=jnp.float32)
    y_im_ref[...] = jnp.dot(d_im_ref[...], x, preferred_element_type=jnp.float32)


# ---------------------------------------------------------------------------
# Wrapper
# ---------------------------------------------------------------------------
def doppler_fft(x, n, window=None, *, dft_dtype=jnp.bfloat16, g_tile=None,
                x_buffers=None, planar_output=False):
    """Pallas TPU equivalent of DopplerFFT.forward.

    x: [Rx, M, G], real float32 or complex64.
    Returns complex64 [Rx, n, G] = fftshift(fft(window * x, n, dim=1), dim=1),
    or the planar (yre, yim) float32 pair if planar_output=True (skips the
    complex recombine pass for planar consumers).
    """
    rx, m_len, g = x.shape
    complex_in = jnp.iscomplexobj(x)

    # Truncation case (n < M): only the first n slow-time samples matter; DMA
    # just round_up(n, 8) rows and drop the dead columns from D.
    k_eff = min(n, m_len)
    m_used = m_len if k_eff == m_len else min(m_len, _round_up(k_eff, 8))
    k_dim = 2 * m_used if complex_in else m_used

    d_a, d_b = _make_dft_mats(n, m_len, m_used, window, dft_dtype, complex_in)

    # Lane-dense output: pad the range axis to a multiple of 128 if needed.
    g_pad = max(_round_up(g, 128), 128)

    if complex_in:
        # Single unavoidable pass: real/imag split, slow-time stack and the
        # bf16 cast are fused into one XLA op producing [Rx, 2*m_used, G].
        xs = x[:, :m_used, :]
        xin = jnp.concatenate([jnp.real(xs), jnp.imag(xs)], axis=1).astype(dft_dtype)
        x_in_bytes = np.dtype(dft_dtype).itemsize
    else:
        # Real path: keep x as-is in HBM; cast to dft_dtype on the VPU in-kernel
        # (a wrapper-side cast would be an extra HBM pass).
        xin = x
        x_in_bytes = np.dtype(x.dtype).itemsize
    if g_pad != g:
        xin = jnp.pad(xin, ((0, 0), (0, 0), (0, g_pad - g)))

    budget = _vmem_budget_bytes()
    d_bytes = np.dtype(dft_dtype).itemsize
    if g_tile is None:
        g_tile = _pick_g_tile(g_pad, rx, n, k_dim, d_bytes, x_in_bytes, budget)
    assert g_pad % g_tile == 0 and g_tile % 128 == 0, "g_tile must be a 128-multiple divisor of padded G"

    def _run(d_buffers, x_bufs):
        d_kw = {} if d_buffers is None else dict(pipeline_mode=pl.Buffered(d_buffers))
        x_kw = {} if x_bufs is None else dict(pipeline_mode=pl.Buffered(x_bufs))
        # Constant index_map -> D stays VMEM resident, never re-DMA'd.
        d_spec = pl.BlockSpec((n, k_dim), lambda r, t: (0, 0), **d_kw)
        x_spec = pl.BlockSpec((None, k_dim, g_tile), lambda r, t: (r, 0, t), **x_kw)
        y_spec = pl.BlockSpec((None, n, g_tile), lambda r, t: (r, 0, t))
        return pl.pallas_call(
            _doppler_dft_kernel,
            out_shape=(jax.ShapeDtypeStruct((rx, n, g_pad), jnp.float32),
                       jax.ShapeDtypeStruct((rx, n, g_pad), jnp.float32)),
            grid=(rx, g_pad // g_tile),
            in_specs=[d_spec, d_spec, x_spec],
            out_specs=(y_spec, y_spec),
            compiler_params=pltpu.CompilerParams(
                dimension_semantics=("parallel", "parallel"),
                vmem_limit_bytes=int(budget)),
        )(d_a, d_b, xin)

    try:
        # Single-buffer the constant D blocks (saves 2*n*K*d_bytes of VMEM).
        yre, yim = _run(1, x_buffers)
    except Exception:
        # pipeline_mode / Buffered(1) not supported by this build: fall back to
        # the default double-buffered specs (correctness identical).
        yre, yim = _run(None, None)

    if g_pad != g:
        yre = yre[:, :, :g]
        yim = yim[:, :, :g]
    if planar_output:
        return yre, yim
    return jax.lax.complex(yre, yim)


# ---------------------------------------------------------------------------
# Demo / self-check
# ---------------------------------------------------------------------------
if __name__ == "__main__":
    key = jax.random.PRNGKey(0)
    kr, ki, k2 = jax.random.split(key, 3)

    # --- complex input, zero-pad case (n > M), Hann window ---
    rx, m_chirps, g_range, n_fft = 4, 16, 256, 32
    x_c = (jax.random.normal(kr, (rx, m_chirps, g_range), jnp.float32)
           + 1j * jax.random.normal(ki, (rx, m_chirps, g_range), jnp.float32)
           ).astype(jnp.complex64)
    win = np.hanning(m_chirps).astype(np.float32)
    ref_c = np.fft.fftshift(
        np.fft.fft(np.asarray(x_c) * win[None, :, None], n=n_fft, axis=1), axes=1)
    scale_c = np.max(np.abs(ref_c)) + 1e-12

    # default bf16 twiddles/input (MXU-native) -> relaxed tolerance
    y_bf16 = jax.block_until_ready(doppler_fft(x_c, n_fft, window=win))
    err_bf16 = np.max(np.abs(np.asarray(y_bf16) - ref_c)) / scale_c
    assert err_bf16 < 3e-2, f"complex bf16 path mismatch: rel err {err_bf16}"

    # f32 twiddles + planar output (no complex recombine pass) -> tight tolerance
    yre, yim = doppler_fft(x_c, n_fft, window=win, dft_dtype=jnp.float32,
                           planar_output=True)
    jax.block_until_ready((yre, yim))
    y_f32 = np.asarray(yre) + 1j * np.asarray(yim)
    err_f32 = np.max(np.abs(y_f32 - ref_c)) / scale_c
    assert err_f32 < 1e-4, f"complex f32 path mismatch: rel err {err_f32}"

    # --- real input, truncation case (n < M), no window, f32 twiddles ---
    rx2, m2, g2, n2 = 2, 16, 128, 8
    x_r = jax.random.normal(k2, (rx2, m2, g2), jnp.float32)
    y_r = jax.block_until_ready(doppler_fft(x_r, n2, window=None,
                                            dft_dtype=jnp.float32))
    ref_r = np.fft.fftshift(np.fft.fft(np.asarray(x_r), n=n2, axis=1), axes=1)
    err_r = (np.max(np.abs(np.asarray(y_r) - ref_r))
             / (np.max(np.abs(ref_r)) + 1e-12))
    assert err_r < 1e-4, f"real-path mismatch: rel err {err_r}"

    print("KERNEL_OK")
</pallas_src>

<mosaic_0001>
module attributes {stable_mosaic.version = 11 : i64} {
  func.func @_doppler_dft_kernel(%arg0: i32, %arg1: i32, %arg2: memref<32x32xbf16, #tpu.memory_space<vmem>>, %arg3: memref<32x32xbf16, #tpu.memory_space<vmem>>, %arg4: memref<1x32x256xbf16, #tpu.memory_space<vmem>>, %arg5: memref<1x32x256xf32, #tpu.memory_space<vmem>>, %arg6: memref<1x32x256xf32, #tpu.memory_space<vmem>>) attributes {dimension_semantics = [#tpu.dimension_semantics<parallel>, #tpu.dimension_semantics<parallel>], iteration_bounds = array<i64: 4, 1>, scalar_prefetch = 0 : i64, scratch_operands = 0 : i64, tpu.core_type = #tpu.core_type<tc>, window_params = [{pipeline_mode = #tpu.pipeline_mode<synchronous>, transform_indices = @transform_0, window_bounds = array<i64: 32, 32>}, {pipeline_mode = #tpu.pipeline_mode<synchronous>, transform_indices = @transform_1, window_bounds = array<i64: 32, 32>}, {transform_indices = @transform_2, window_bounds = array<i64: 1, 32, 256>}, {transform_indices = @transform_3, window_bounds = array<i64: 1, 32, 256>}, {transform_indices = @transform_4, window_bounds = array<i64: 1, 32, 256>}]} {
    %c0 = arith.constant 0 : index
    %c0_0 = arith.constant 0 : index
    %c0_1 = arith.constant 0 : index
    %0 = vector.load %arg4[%c0, %c0_0, %c0_1] : memref<1x32x256xbf16, #tpu.memory_space<vmem>>, vector<1x32x256xbf16>
    %1 = vector.shape_cast %0 : vector<1x32x256xbf16> to vector<32x256xbf16>
    %c0_2 = arith.constant 0 : index
    %c0_3 = arith.constant 0 : index
    %2 = vector.load %arg2[%c0_2, %c0_3] : memref<32x32xbf16, #tpu.memory_space<vmem>>, vector<32x32xbf16>
    %cst = arith.constant dense<0.000000e+00> : vector<32x256xf32>
    %3 = tpu.matmul %2, %1, %cst {dimension_numbers = #tpu.dot_dimension_numbers<[1], [0], [0], [1], [0, 0, 1, 1], [], []>} : vector<32x32xbf16>, vector<32x256xbf16>, vector<32x256xf32> -> vector<32x256xf32>
    %c0_4 = arith.constant 0 : index
    %c0_5 = arith.constant 0 : index
    %c0_6 = arith.constant 0 : index
    %4 = vector.load %arg5[%c0_4, %c0_5, %c0_6] : memref<1x32x256xf32, #tpu.memory_space<vmem>>, vector<1x32x256xf32>
    %5 = vector.shape_cast %4 : vector<1x32x256xf32> to vector<32x256xf32>
    %6 = vector.shape_cast %3 : vector<32x256xf32> to vector<1x32x256xf32>
    tpu.vector_store %arg5[%c0_4, %c0_5, %c0_6], %6 {strides = array<i32>} : memref<1x32x256xf32, #tpu.memory_space<vmem>>, vector<1x32x256xf32>,
    %c0_7 = arith.constant 0 : index
    %c0_8 = arith.constant 0 : index
    %7 = vector.load %arg3[%c0_7, %c0_8] : memref<32x32xbf16, #tpu.memory_space<vmem>>, vector<32x32xbf16>
    %cst_9 = arith.constant dense<0.000000e+00> : vector<32x256xf32>
    %8 = tpu.matmul %7, %1, %cst_9 {dimension_numbers = #tpu.dot_dimension_numbers<[1], [0], [0], [1], [0, 0, 1, 1], [], []>} : vector<32x32xbf16>, vector<32x256xbf16>, vector<32x256xf32> -> vector<32x256xf32>
    %c0_10 = arith.constant 0 : index
    %c0_11 = arith.constant 0 : index
    %c0_12 = arith.constant 0 : index
    %9 = vector.load %arg6[%c0_10, %c0_11, %c0_12] : memref<1x32x256xf32, #tpu.memory_space<vmem>>, vector<1x32x256xf32>
    %10 = vector.shape_cast %9 : vector<1x32x256xf32> to vector<32x256xf32>
    %11 = vector.shape_cast %8 : vector<32x256xf32> to vector<1x32x256xf32>
    tpu.vector_store %arg6[%c0_10, %c0_11, %c0_12], %11 {strides = array<i32>} : memref<1x32x256xf32, #tpu.memory_space<vmem>>, vector<1x32x256xf32>,
    return
  }
  func.func @transform_0(%arg0: i32, %arg1: i32) -> (i32, i32) {
    %c0_i32 = arith.constant 0 : i32
    %c0_i32_0 = arith.constant 0 : i32
    %c0_i32_1 = arith.constant 0 : i32
    return %c0_i32, %c0_i32_0 : i32, i32
  }
  func.func @transform_1(%arg0: i32, %arg1: i32) -> (i32, i32) {
    %c0_i32 = arith.constant 0 : i32
    %c0_i32_0 = arith.constant 0 : i32
    %c0_i32_1 = arith.constant 0 : i32
    return %c0_i32, %c0_i32_0 : i32, i32
  }
  func.func @transform_2(%arg0: i32, %arg1: i32) -> (i32, i32, i32) {
    %c0_i32 = arith.constant 0 : i32
    %c0_i32_0 = arith.constant 0 : i32
    return %arg0, %c0_i32, %arg1 : i32, i32, i32
  }
  func.func @transform_3(%arg0: i32, %arg1: i32) -> (i32, i32, i32) {
    %c0_i32 = arith.constant 0 : i32
    %c0_i32_0 = arith.constant 0 : i32
    return %arg0, %c0_i32, %arg1 : i32, i32, i32
  }
  func.func @transform_4(%arg0: i32, %arg1: i32) -> (i32, i32, i32) {
    %c0_i32 = arith.constant 0 : i32
    %c0_i32_0 = arith.constant 0 : i32
    return %arg0, %c0_i32, %arg1 : i32, i32, i32
  }
}

module attributes {stable_mosaic.version = 11 : i64} {
  func.func @_doppler_dft_kernel(%arg0: i32, %arg1: i32, %arg2: memref<32x32xbf16, #tpu.memory_space<vmem>>, %arg3: memref<32x32xbf16, #tpu.memory_space<vmem>>, %arg4: memref<1x32x256xbf16, #tpu.memory_space<vmem>>, %arg5: memref<1x32x256xf32, #tpu.memory_space<vmem>>, %arg6: memref<1x32x256xf32, #tpu.memory_space<vmem>>) attributes {dimension_semantics = [#tpu.dimension_semantics<parallel>, #tpu.dimension_semantics<parallel>], iteration_bounds = array<i64: 4, 1>, scalar_prefetch = 0 : i64, scratch_operands = 0 : i64, tpu.core_type = #tpu.core_type<tc>, window_params = [{pipeline_mode = #tpu.pipeline_mode<synchronous>, transform_indices = @transform_0, window_bounds = array<i64: 32, 32>}, {pipeline_mode = #tpu.pipeline_mode<synchronous>, transform_indices = @transform_1, window_bounds = array<i64: 32, 32>}, {transform_indices = @transform_2, window_bounds = array<i64: 1, 32, 256>}, {transform_indices = @transform_3, window_bounds = array<i64: 1, 32, 256>}, {transform_indices = @transform_4, window_bounds = array<i64: 1, 32, 256>}]} {
    %c0 = arith.constant 0 : index
    %c0_0 = arith.constant 0 : index
    %c0_1 = arith.constant 0 : index
    %0 = vector.load %arg4[%c0, %c0_0, %c0_1] : memref<1x32x256xbf16, #tpu.memory_space<vmem>>, vector<1x32x256xbf16>
    %1 = vector.shape_cast %0 : vector<1x32x256xbf16> to vector<32x256xbf16>
    %c0_2 = arith.constant 0 : index
    %c0_3 = arith.constant 0 : index
    %2 = vector.load %arg2[%c0_2, %c0_3] : memref<32x32xbf16, #tpu.memory_space<vmem>>, vector<32x32xbf16>
    %cst = arith.constant dense<0.000000e+00> : vector<32x256xf32>
    %3 = tpu.matmul %2, %1, %cst {dimension_numbers = #tpu.dot_dimension_numbers<[1], [0], [0], [1], [0, 0, 1, 1], [], []>} : vector<32x32xbf16>, vector<32x256xbf16>, vector<32x256xf32> -> vector<32x256xf32>
    %c0_4 = arith.constant 0 : index
    %c0_5 = arith.constant 0 : index
    %c0_6 = arith.constant 0 : index
    %4 = vector.load %arg5[%c0_4, %c0_5, %c0_6] : memref<1x32x256xf32, #tpu.memory_space<vmem>>, vector<1x32x256xf32>
    %5 = vector.shape_cast %4 : vector<1x32x256xf32> to vector<32x256xf32>
    %6 = vector.shape_cast %3 : vector<32x256xf32> to vector<1x32x256xf32>
    tpu.vector_store %arg5[%c0_4, %c0_5, %c0_6], %6 {strides = array<i32>} : memref<1x32x256xf32, #tpu.memory_space<vmem>>, vector<1x32x256xf32>,
    %c0_7 = arith.constant 0 : index
    %c0_8 = arith.constant 0 : index
    %7 = vector.load %arg3[%c0_7, %c0_8] : memref<32x32xbf16, #tpu.memory_space<vmem>>, vector<32x32xbf16>
    %cst_9 = arith.constant dense<0.000000e+00> : vector<32x256xf32>
    %8 = tpu.matmul %7, %1, %cst_9 {dimension_numbers = #tpu.dot_dimension_numbers<[1], [0], [0], [1], [0, 0, 1, 1], [], []>} : vector<32x32xbf16>, vector<32x256xbf16>, vector<32x256xf32> -> vector<32x256xf32>
    %c0_10 = arith.constant 0 : index
    %c0_11 = arith.constant 0 : index
    %c0_12 = arith.constant 0 : index
    %9 = vector.load %arg6[%c0_10, %c0_11, %c0_12] : memref<1x32x256xf32, #tpu.memory_space<vmem>>, vector<1x32x256xf32>
    %10 = vector.shape_cast %9 : vector<1x32x256xf32> to vector<32x256xf32>
    %11 = vector.shape_cast %8 : vector<32x256xf32> to vector<1x32x256xf32>
    tpu.vector_store %arg6[%c0_10, %c0_11, %c0_12], %11 {strides = array<i32>} : memref<1x32x256xf32, #tpu.memory_space<vmem>>, vector<1x32x256xf32>,
    return
  }
  func.func @transform_0(%arg0: i32, %arg1: i32) -> (i32, i32) {
    %c0_i32 = arith.constant 0 : i32
    %c0_i32_0 = arith.constant 0 : i32
    %c0_i32_1 = arith.constant 0 : i32
    return %c0_i32, %c0_i32_0 : i32, i32
  }
  func.func @transform_1(%arg0: i32, %arg1: i32) -> (i32, i32) {
    %c0_i32 = arith.constant 0 : i32
    %c0_i32_0 = arith.constant 0 : i32
    %c0_i32_1 = arith.constant 0 : i32
    return %c0_i32, %c0_i32_0 : i32, i32
  }
  func.func @transform_2(%arg0: i32, %arg1: i32) -> (i32, i32, i32) {
    %c0_i32 = arith.constant 0 : i32
    %c0_i32_0 = arith.constant 0 : i32
    return %arg0, %c0_i32, %arg1 : i32, i32, i32
  }
  func.func @transform_3(%arg0: i32, %arg1: i32) -> (i32, i32, i32) {
    %c0_i32 = arith.constant 0 : i32
    %c0_i32_0 = arith.constant 0 : i32
    return %arg0, %c0_i32, %arg1 : i32, i32, i32
  }
  func.func @transform_4(%arg0: i32, %arg1: i32) -> (i32, i32, i32) {
    %c0_i32 = arith.constant 0 : i32
    %c0_i32_0 = arith.constant 0 : i32
    return %arg0, %c0_i32, %arg1 : i32, i32, i32
  }
}

</mosaic_0001>

<llo_original>
// kernel: tpu_custom_call.1
$region0: #{tpu_custom_call.1}
  #allocation0 [shape = 'u32[]', space=smem, size = 0x4, offset = 0x4, fixed_abs, tag = 'smem constant byte address 0x4 - core index']
  #allocation1 [shape = 'u32[144,128]{1,0:T(1,128)}', space=vmem, size = 0x12000, scoped, tag = 'internal scratch']
  %s0 = inlined_call_operand.hbm [shape: bf16[32,32], index: 0, kind: input, shape index: {}]
  %s1 = inlined_call_operand.hbm [shape: bf16[32,32], index: 1, kind: input, shape index: {}]
  %s2 = inlined_call_operand.hbm [shape: bf16[4,32,256], index: 2, kind: input, shape index: {}]
  %s3 = inlined_call_operand.hbm [shape: f32[4,32,256], index: 3, kind: output, shape index: {0}]
  %s4 = inlined_call_operand.hbm [shape: f32[4,32,256], index: 4, kind: output, shape index: {1}]
  %5 = xla_tuple %s3, %s4
  %s6 = sld [smem:[#allocation0]]
  $region65: #{tpu_custom_call.1} parent=0
    _
  %s8 = ssub.s32 1, %s6
  %s9 = scalar_select 0, %s8, %s6
  $region1: #{tpu_custom_call.1} parent=0
    #allocation2 [shape = 'u8[8192]{0}', space=vmem, size = 0x2000, scoped, tag = 'input window, operand 0, single buffered']
    #allocation3 [shape = 's32[2]{0}', space=sflag, size = 0x8, scoped, tag = 'scoped memory for tpu_custom_call.1']
    #allocation4 [shape = 's32[2]{0}', space=sflag, size = 0x8, scoped, tag = 'scoped memory for tpu_custom_call.1']
    #allocation5 [shape = 'u8[8192]{0}', space=vmem, size = 0x2000, scoped, tag = 'input window, operand 1, single buffered']
    #allocation6 [shape = 's32[1]{0}', space=sflag, size = 0x4, scoped, tag = 'scoped memory for tpu_custom_call.1']
    #allocation7 [shape = 'u8[32768]{0}', space=vmem, size = 0x8000, scoped, tag = 'input window, operand 2']
    #allocation8 [shape = 'u8[65536]{0}', space=vmem, size = 0x10000, scoped, tag = 'output window, operand 0']
    #allocation9 [shape = 'u8[65536]{0}', space=vmem, size = 0x10000, scoped, tag = 'output window, operand 1']
    #allocation10 [shape = 's32[2]{0}', space=sflag, size = 0x8, scoped, tag = 'scoped memory for tpu_custom_call.1']
    %10 = vsyncpa [#allocation3], 0
    %11 = vsyncpa [#allocation6], 0
    %12 = vsyncpa [#allocation4], 0
    %s13 = scalar_lea.sflag [#allocation4], 1
    %14 = vsyncpa %s13, 0
    %15 = vsyncpa [#allocation10], 0
    %s16 = scalar_lea.sflag [#allocation10], 1
    %17 = vsyncpa %s16, 0
    loop: start=0, step=1, limit=6
    $region2: #{tpu_custom_call.1} parent=1 // loop_pre_header
      _
    $region3: #{tpu_custom_call.1} parent=1 // loop_header
      %s19 = sphi 0, %s23
      %p20 = scmp.ge.s32.totalorder %s19, 6
      %s26 = sphi 0, %s38
      %s27 = sphi 0, %s34
      %s28 = sphi 0, %s26
      %s29 = sphi 0, %s27
      %s30 = sphi 0, %s28
      %s31 = sphi 0, %s29
      %s39 = sphi 0, %s39
      %s41 = sphi 0, %s39
      %s42 = sphi 0, %s41
      %s56 = sphi 0, %s42
      %s60 = sphi 0, %s60
      %s62 = sphi 0, %s60
      %s63 = sphi 0, %s62
      %s77 = sphi 0, %s63
      %s85 = sphi 0, %s87
      %s88 = sphi 0, %s85
      %s89 = sphi 0, %s88
      %s105 = sphi 0, %s89
      %s113 = sphi 0, %s115
      %s116 = sphi 0, %s113
      %s117 = sphi 0, %s116
      %s133 = sphi 0, %s117
      %s141 = sphi 0, %s143
      %s144 = sphi 0, %s141
      %s145 = sphi 0, %s144
      %s161 = sphi 0, %s145
    $region4: #{tpu_custom_call.1} parent=1 // loop_header_branch
      %22 = sbr.rel (%p20) target = $region8
    $region5: #{tpu_custom_call.1} parent=1 // loop_body
      %s24 = ssub.s32 %s19, 1
      %s25 = ssub.s32 %s19, 2
      %s32 = sadd.s32 1, %s27
      %p33 = scmp.ge.s32.totalorder %s32, 1
      %s34 = scalar_select %p33, 0, %s32
      %s35 = sadd.s32 1, %s26
      %s36 = scalar_select %p33, %s35, %s26
      %p37 = scmp.ge.s32.totalorder %s36, 4
      %s38 = scalar_select %p37, 0, %s36
      %s40 = sadd.s32 %s39, 1
      %p43 = scmp.eq.s32.totalorder %s19, 3
      %p44 = scmp.ne.s32.totalorder %s39, %s41
      %p45 = scmp.eq.s32.totalorder %s19, 0
      %p46 = por %p44, %p45
      %p47 = scmp.ne.s32.totalorder %s39, %s41
      %p48 = scmp.eq.s32.totalorder %s24, 3
      %p49 = por %p47, %p48
      %p50 = scmp.ne.s32.totalorder %s41, %s42
      %p51 = scmp.eq.s32.totalorder %s24, 0
      %p52 = por %p50, %p51
      %p53 = scmp.ne.s32.totalorder %s41, %s42
      %p54 = scmp.eq.s32.totalorder %s25, 3
      %p55 = por %p53, %p54
      %p57 = scmp.ne.s32.totalorder %s42, %s56
      %p58 = scmp.eq.s32.totalorder %s25, 0
      %p59 = por %p57, %p58
      %s61 = sadd.s32 %s60, 1
      %p64 = scmp.eq.s32.totalorder %s19, 3
      %p65 = scmp.ne.s32.totalorder %s60, %s62
      %p66 = scmp.eq.s32.totalorder %s19, 0
      %p67 = por %p65, %p66
      %p68 = scmp.ne.s32.totalorder %s60, %s62
      %p69 = scmp.eq.s32.totalorder %s24, 3
      %p70 = por %p68, %p69
      %p71 = scmp.ne.s32.totalorder %s62, %s63
      %p72 = scmp.eq.s32.totalorder %s24, 0
      %p73 = por %p71, %p72
      %p74 = scmp.ne.s32.totalorder %s62, %s63
      %p75 = scmp.eq.s32.totalorder %s25, 3
      %p76 = por %p74, %p75
      %p78 = scmp.ne.s32.totalorder %s63, %s77
      %p79 = scmp.eq.s32.totalorder %s25, 0
      %p80 = por %p78, %p79
      %s81 = ssub.s32 %s26, %s38
      %s82 = ssub.s32 %s27, %s34
      %s83 = sor.u32 %s81, %s82
      %p84 = scmp.eq.s32.totalorder %s83, 0
      %s86 = sadd.s32 %s85, 1
      %s87 = scalar_select %p84, %s85, %s86
      %p90 = pneg %p84
      %p91 = scmp.eq.s32.totalorder %s19, 3
      %p92 = por %p90, %p91
      %p93 = scmp.ne.s32.totalorder %s85, %s88
      %p94 = scmp.eq.s32.totalorder %s19, 0
      %p95 = por %p93, %p94
      %p96 = scmp.ne.s32.totalorder %s85, %s88
      %p97 = scmp.eq.s32.totalorder %s24, 3
      %p98 = por %p96, %p97
      %p99 = scmp.ne.s32.totalorder %s88, %s89
      %p100 = scmp.eq.s32.totalorder %s24, 0
      %p101 = por %p99, %p100
      %p102 = scmp.ne.s32.totalorder %s88, %s89
      %p103 = scmp.eq.s32.totalorder %s25, 3
      %p104 = por %p102, %p103
      %p106 = scmp.ne.s32.totalorder %s89, %s105
      %p107 = scmp.eq.s32.totalorder %s25, 0
      %p108 = por %p106, %p107
      %s109 = ssub.s32 %s26, %s38
      %s110 = ssub.s32 %s27, %s34
      %s111 = sor.u32 %s109, %s110
      %p112 = scmp.eq.s32.totalorder %s111, 0
      %s114 = sadd.s32 %s113, 1
      %s115 = scalar_select %p112, %s113, %s114
      %p118 = pneg %p112
      %p119 = scmp.eq.s32.totalorder %s19, 3
      %p120 = por %p118, %p119
      %p121 = scmp.ne.s32.totalorder %s113, %s116
      %p122 = scmp.eq.s32.totalorder %s19, 0
      %p123 = por %p121, %p122
      %p124 = scmp.ne.s32.totalorder %s113, %s116
      %p125 = scmp.eq.s32.totalorder %s24, 3
      %p126 = por %p124, %p125
      %p127 = scmp.ne.s32.totalorder %s116, %s117
      %p128 = scmp.eq.s32.totalorder %s24, 0
      %p129 = por %p127, %p128
      %p130 = scmp.ne.s32.totalorder %s116, %s117
      %p131 = scmp.eq.s32.totalorder %s25, 3
      %p132 = por %p130, %p131
      %p134 = scmp.ne.s32.totalorder %s117, %s133
      %p135 = scmp.eq.s32.totalorder %s25, 0
      %p136 = por %p134, %p135
      %s137 = ssub.s32 %s26, %s38
      %s138 = ssub.s32 %s27, %s34
      %s139 = sor.u32 %s137, %s138
      %p140 = scmp.eq.s32.totalorder %s139, 0
      %s142 = sadd.s32 %s141, 1
      %s143 = scalar_select %p140, %s141, %s142
      %p146 = pneg %p140
      %p147 = scmp.eq.s32.totalorder %s19, 3
      %p148 = por %p146, %p147
      %p149 = scmp.ne.s32.totalorder %s141, %s144
      %p150 = scmp.eq.s32.totalorder %s19, 0
      %p151 = por %p149, %p150
      %p152 = scmp.ne.s32.totalorder %s141, %s144
      %p153 = scmp.eq.s32.totalorder %s24, 3
      %p154 = por %p152, %p153
      %p155 = scmp.ne.s32.totalorder %s144, %s145
      %p156 = scmp.eq.s32.totalorder %s24, 0
      %p157 = por %p155, %p156
      %p158 = scmp.ne.s32.totalorder %s144, %s145
      %p159 = scmp.eq.s32.totalorder %s25, 3
      %p160 = por %p158, %p159
      %p162 = scmp.ne.s32.totalorder %s145, %s161
      %p163 = scmp.eq.s32.totalorder %s25, 0
      %p164 = por %p162, %p163
      %p165 = scmp.le.s32.totalorder 1, %s19
      %p166 = scmp.lt.s32.totalorder %s19, 5
      %p167 = pnand %p165, %p166
      %p168 = pneg %p167
      // Predicated region
      $region9: #{tpu_custom_call.1} parent=5 // pred_check
        _
      $region10: #{tpu_custom_call.1} parent=5 // pred_check_branch
        %170 = sbr.rel (%p167) target = $region12
      $region11: #{tpu_custom_call.1} parent=5 // pred_region
        %s171 = ssub.s32 %s19, 1
        // Predicated region
        $region13: #{tpu_custom_call.1} parent=11 // pred_check
          %p172 = pneg %p52
        $region14: #{tpu_custom_call.1} parent=11 // pred_check_branch
          %174 = sbr.rel (%p172) target = $region16
        $region15: #{tpu_custom_call.1} parent=11 // pred_region
          %s176 = ssub.s32 256, 256
          %177 = vsyncadd [#allocation3], %s176
          %s178 = sshll.u32 [#allocation2], 4
          %s179 = int_to_ptr.vmem [resolvable:$true] %s178
          %184 = dma.hbm_to_vmem [thread:$0]  %s0, 256, %s179, [#allocation3], 64, 64, 4
        $region16: #{tpu_custom_call.1} parent=11 // pred_fallthru
          _
        // Predicated region
        $region17: #{tpu_custom_call.1} parent=11 // pred_check
          %p185 = pneg %p73
        $region18: #{tpu_custom_call.1} parent=11 // pred_check_branch
          %187 = sbr.rel (%p185) target = $region20
        $region19: #{tpu_custom_call.1} parent=11 // pred_region
          %s189 = ssub.s32 256, 256
          %190 = vsyncadd [#allocation6], %s189
          %s191 = sshll.u32 [#allocation5], 4
          %s192 = int_to_ptr.vmem [resolvable:$true] %s191
          %197 = dma.hbm_to_vmem [thread:$0]  %s1, 256, %s192, [#allocation6], 64, 64, 4
        $region20: #{tpu_custom_call.1} parent=11 // pred_fallthru
          _
      $region12: #{tpu_custom_call.1} parent=5 // pred_fallthru
        _
      %p198 = scmp.lt.s32.totalorder %s19, 4
      // Predicated region
      $region21: #{tpu_custom_call.1} parent=5 // pred_check
        %p199 = pneg %p198
      $region22: #{tpu_custom_call.1} parent=5 // pred_check_branch
        %201 = sbr.rel (%p199) target = $region24
      $region23: #{tpu_custom_call.1} parent=5 // pred_region
        // Predicated region
        $region25: #{tpu_custom_call.1} parent=23 // pred_check
          %p202 = pneg %p95
        $region26: #{tpu_custom_call.1} parent=23 // pred_check_branch
          %204 = sbr.rel (%p202) target = $region28
        $region27: #{tpu_custom_call.1} parent=23 // pred_region
          %s205 = sand.u32 %s19, 1
          %s206 = scalar_lea.sflag [#allocation3], %s205
          %s207 = sand.u32 %s85, 1
          %s208 = smul.addr %s207, 32
          %s209 = scalar_lea.vmem [#allocation7], %s208
          %s210 = smul.u32 2, %s27
          %s212 = ssub.s32 512, 512
          %213 = vsyncadd %s206, %s212
          %s214 = smul.addr %s26, 8
          %s215 = sadd.s32 %s210, %s214
          %s216 = smul.addr %s215, 64
          %s217 = scalar_lea.hbm %s2, %s216
          %s218 = sshll.u32 %s209, 4
          %s219 = int_to_ptr.vmem [resolvable:$true] %s218
          %224 = dma.hbm_to_vmem [thread:$0]  %s217, 512, %s219, %s206, 128, 128, 8
        $region28: #{tpu_custom_call.1} parent=23 // pred_fallthru
          _
      $region24: #{tpu_custom_call.1} parent=5 // pred_fallthru
        _
      %p225 = scmp.le.s32.totalorder 1, %s19
      %p226 = scmp.lt.s32.totalorder %s19, 5
      %p227 = pnand %p225, %p226
      %p228 = pneg %p227
      // Predicated region
      $region29: #{tpu_custom_call.1} parent=5 // pred_check
        _
      $region30: #{tpu_custom_call.1} parent=5 // pred_check_branch
        %230 = sbr.rel (%p227) target = $region32
      $region31: #{tpu_custom_call.1} parent=5 // pred_region
        %s231 = ssub.s32 %s19, 1
        // Predicated region
        $region33: #{tpu_custom_call.1} parent=31 // pred_check
          %p232 = pneg %p52
        $region34: #{tpu_custom_call.1} parent=31 // pred_check_branch
          %234 = sbr.rel (%p232) target = $region36
        $region35: #{tpu_custom_call.1} parent=31 // pred_region
          %235 = dma.done [#allocation3], 256
        $region36: #{tpu_custom_call.1} parent=31 // pred_fallthru
          _
        // Predicated region
        $region37: #{tpu_custom_call.1} parent=31 // pred_check
          %p236 = pneg %p73
        $region38: #{tpu_custom_call.1} parent=31 // pred_check_branch
          %238 = sbr.rel (%p236) target = $region40
        $region39: #{tpu_custom_call.1} parent=31 // pred_region
          %239 = dma.done [#allocation6], 256
        $region40: #{tpu_custom_call.1} parent=31 // pred_fallthru
          _
        %s240 = sand.u32 %s24, 1
        %s241 = scalar_lea.sflag [#allocation3], %s240
        %s242 = sand.u32 %s88, 1
        %s243 = smul.addr %s242, 32
        %s244 = scalar_lea.vmem [#allocation7], %s243
        // Predicated region
        $region41: #{tpu_custom_call.1} parent=31 // pred_check
          %p245 = pneg %p101
        $region42: #{tpu_custom_call.1} parent=31 // pred_check_branch
          %247 = sbr.rel (%p245) target = $region44
        $region43: #{tpu_custom_call.1} parent=31 // pred_region
          %248 = dma.done %s241, 512
        $region44: #{tpu_custom_call.1} parent=31 // pred_fallthru
          _
        %p249 = pneg %p52
        %p250 = pneg %p49
        %p251 = pneg %p73
        %p252 = pneg %p70
        %s253 = sand.u32 %s24, 1
        %s254 = scalar_lea.sflag [#allocation3], %s253
        %s255 = sand.u32 %s88, 1
        %s256 = smul.addr %s255, 32
        %s257 = scalar_lea.vmem [#allocation7], %s256
        %p258 = pneg %p101
        %p259 = pneg %p98
        %p260 = pneg %p129
        %p261 = pneg %p126
        %s262 = sand.u32 %s116, 1
        %s263 = scalar_lea.sflag [#allocation4], %s262
        %s264 = sand.u32 %s116, 1
        %s265 = smul.addr %s264, 64
        %s266 = scalar_lea.vmem [#allocation8], %s265
        %p267 = pneg %p157
        %p268 = pneg %p154
        %s269 = sand.u32 %s144, 1
        %s270 = scalar_lea.sflag [#allocation10], %s269
        %s271 = sand.u32 %s144, 1
        %s272 = smul.addr %s271, 64
        %s273 = scalar_lea.vmem [#allocation9], %s272
        %s274 = smul.u32 2, %s29
        %s275 = smul.u32 2, %s29
        %s276 = smul.u32 2, %s29
        %v278 = vld [vmem:[%s244] sm:$0xff]
        %v279 = vld [vmem:[%s244 + $0x8] sm:$0xff]
        %v280 = vld [vmem:[%s244 + $0x10] sm:$0xff]
        %v281 = vld [vmem:[%s244 + $0x18] sm:$0xff]
        %v282 = vld [vmem:[#allocation2] sm:$0xf]
        %v283 = vld [vmem:[#allocation2 + $0x4] sm:$0xf]
        %v284 = vld [vmem:[#allocation2 + $0x8] sm:$0xf]
        %v285 = vld [vmem:[#allocation2 + $0xc] sm:$0xf]
        %v290 = vunpack.c.l.b16 %v282
        %v291 = vunpack.c.l.b16 %v283
        %v292 = vunpack.c.l.b16 %v284
        %v293 = vunpack.c.l.b16 %v285
        %v294 = vpack.c.b16 %v291, %v290
        %v295 = vpack.c.b16 %v293, %v292
        %v300 = vunpack.c.l.b16 %v278
        %v301 = vunpack.c.h.b16 %v278
        %v302 = vunpack.c.l.b16 %v279
        %v303 = vunpack.c.h.b16 %v279
        %v304 = vunpack.c.l.b16 %v280
        %v305 = vunpack.c.h.b16 %v280
        %v306 = vunpack.c.l.b16 %v281
        %v307 = vunpack.c.h.b16 %v281
        %v308 = vpack.c.b16 %v302, %v300
        %v309 = vpack.c.b16 %v303, %v301
        %v310 = vpack.c.b16 %v306, %v304
        %v311 = vpack.c.b16 %v307, %v305
        %vm316 = vcmask 261120
        %v318 = vsel %vm316, %v294, 0
        %v321 = vsel %vm316, %v295, 0
        %323 = vmatprep.subr.bf16.mxu0 0
        %324 = vmatpush1.bf16.msra.mxu0 0
        %325 = vmatprep.subr.bf16.mxu0 0
        %326 = vmatpush1.bf16.msra.mxu0 0
        %327 = vmatprep.subr.bf16.mxu0 0
        %328 = vmatpush1.bf16.msra.mxu0 0
        %329 = vmatprep.subr.bf16.mxu0 0
        %330 = vmatpush1.bf16.msra.mxu0 0
        %331 = vmatprep.subr.bf16.mxu0 0
        %332 = vmatpush1.bf16.msra.mxu0 0
        %333 = vmatprep.subr.bf16.mxu0 0
        %334 = vmatpush1.bf16.msra.mxu0 0
        %335 = vmatprep.subr.bf16.mxu0 %v311
        %336 = vmatpush1.bf16.msra.mxu0 %v310
        %337 = vmatprep.subr.bf16.mxu0 %v309
        %338 = vmatpush1.bf16.msra.mxu0 %v308
        %339 = vmatprep.subr.bf16.mxu0 0
        %340 = vmatpush2.bf16.msra.mxu0 0
        %341 = vmatprep.subr.bf16.mxu0 0
        %342 = vmatpush2.bf16.msra.mxu0 0
        %343 = vmatprep.subr.bf16.mxu0 0
        %344 = vmatpush2.bf16.msra.mxu0 0
        %345 = vmatprep.subr.bf16.mxu0 0
        %346 = vmatpush2.bf16.msra.mxu0 0
        %347 = vmatprep.subr.bf16.mxu0 0
        %348 = vmatpush2.bf16.msra.mxu0 0
        %349 = vmatprep.subr.bf16.mxu0 0
        %350 = vmatpush2.bf16.msra.mxu0 0
        %351 = vmatprep.subr.bf16.mxu0 0
        %352 = vmatpush2.bf16.msra.mxu0 0
        %353 = vmatprep.subr.bf16.mxu0 0
        %354 = vmatpush2.bf16.msra.mxu0 0
        %355 = vmatprep.mubr.bf16.mxu0 0
        %356 = vmatmul.mubr.bf16.gmra.mxu0 %v318
        %v357 = vpop.f32.mrf.mxu0
        %v358 = vadd.f32 0.0, %v357
        %v359 = vpop.f32.mrf.mxu0
        %v360 = vadd.f32 0.0, %v359
        %v361 = vpop.f32.mrf.mxu0
        %v362 = vadd.f32 0.0, %v361
        %v363 = vpop.f32.mrf.mxu0
        %v364 = vadd.f32 0.0, %v363
        %365 = vmatprep.mubr.bf16.mxu0 0
        %366 = vmatmul.mubr.bf16.gmra.mxu0 %v321
        %v367 = vpop.f32.mrf.mxu0
        %v368 = vadd.f32 0.0, %v367
        %v369 = vpop.f32.mrf.mxu0
        %v370 = vadd.f32 0.0, %v369
        %v371 = vpop.f32.mrf.mxu0
        %v372 = vadd.f32 0.0, %v371
        %v373 = vpop.f32.mrf.mxu0
        %v374 = vadd.f32 0.0, %v373
        %375 = vdwg.mxu0
        %376 = vst [vmem:[%s266] sm:$0xff] %v358
        %377 = vst [vmem:[%s266 + $0x8] sm:$0xff] %v360
        %378 = vst [vmem:[%s266 + $0x10] sm:$0xff] %v362
        %379 = vst [vmem:[%s266 + $0x18] sm:$0xff] %v364
        %380 = vst [vmem:[%s266 + $0x20] sm:$0xff] %v368
        %381 = vst [vmem:[%s266 + $0x28] sm:$0xff] %v370
        %382 = vst [vmem:[%s266 + $0x30] sm:$0xff] %v372
        %383 = vst [vmem:[%s266 + $0x38] sm:$0xff] %v374
        %v384 = vld [vmem:[#allocation5] sm:$0xf]
        %v385 = vld [vmem:[#allocation5 + $0x4] sm:$0xf]
        %v386 = vld [vmem:[#allocation5 + $0x8] sm:$0xf]
        %v387 = vld [vmem:[#allocation5 + $0xc] sm:$0xf]
        %v392 = vunpack.c.l.b16 %v384
        %v393 = vunpack.c.l.b16 %v385
        %v394 = vunpack.c.l.b16 %v386
        %v395 = vunpack.c.l.b16 %v387
        %v396 = vpack.c.b16 %v393, %v392
        %v397 = vpack.c.b16 %v395, %v394
        %v399 = vsel %vm316, %v396, 0
        %v402 = vsel %vm316, %v397, 0
        %404 = vmatprep.subr.bf16.mxu0 0
        %405 = vmatpush1.bf16.msra.mxu0 0
        %406 = vmatprep.subr.bf16.mxu0 0
        %407 = vmatpush1.bf16.msra.mxu0 0
        %408 = vmatprep.subr.bf16.mxu0 0
        %409 = vmatpush1.bf16.msra.mxu0 0
        %410 = vmatprep.subr.bf16.mxu0 0
        %411 = vmatpush1.bf16.msra.mxu0 0
        %412 = vmatprep.subr.bf16.mxu0 0
        %413 = vmatpush1.bf16.msra.mxu0 0
        %414 = vmatprep.subr.bf16.mxu0 0
        %415 = vmatpush1.bf16.msra.mxu0 0
        %416 = vmatprep.subr.bf16.mxu0 %v311
        %417 = vmatpush1.bf16.msra.mxu0 %v310
        %418 = vmatprep.subr.bf16.mxu0 %v309
        %419 = vmatpush1.bf16.msra.mxu0 %v308
        %420 = vmatprep.subr.bf16.mxu0 0
        %421 = vmatpush2.bf16.msra.mxu0 0
        %422 = vmatprep.subr.bf16.mxu0 0
        %423 = vmatpush2.bf16.msra.mxu0 0
        %424 = vmatprep.subr.bf16.mxu0 0
        %425 = vmatpush2.bf16.msra.mxu0 0
        %426 = vmatprep.subr.bf16.mxu0 0
        %427 = vmatpush2.bf16.msra.mxu0 0
        %428 = vmatprep.subr.bf16.mxu0 0
        %429 = vmatpush2.bf16.msra.mxu0 0
        %430 = vmatprep.subr.bf16.mxu0 0
        %431 = vmatpush2.bf16.msra.mxu0 0
        %432 = vmatprep.subr.bf16.mxu0 0
        %433 = vmatpush2.bf16.msra.mxu0 0
        %434 = vmatprep.subr.bf16.mxu0 0
        %435 = vmatpush2.bf16.msra.mxu0 0
        %436 = vmatprep.mubr.bf16.mxu0 0
        %437 = vmatmul.mubr.bf16.gmra.mxu0 %v399
        %v438 = vpop.f32.mrf.mxu0
        %v439 = vadd.f32 0.0, %v438
        %v440 = vpop.f32.mrf.mxu0
        %v441 = vadd.f32 0.0, %v440
        %v442 = vpop.f32.mrf.mxu0
        %v443 = vadd.f32 0.0, %v442
        %v444 = vpop.f32.mrf.mxu0
        %v445 = vadd.f32 0.0, %v444
        %446 = vmatprep.mubr.bf16.mxu0 0
        %447 = vmatmul.mubr.bf16.gmra.mxu0 %v402
        %v448 = vpop.f32.mrf.mxu0
        %v449 = vadd.f32 0.0, %v448
        %v450 = vpop.f32.mrf.mxu0
        %v451 = vadd.f32 0.0, %v450
        %v452 = vpop.f32.mrf.mxu0
        %v453 = vadd.f32 0.0, %v452
        %v454 = vpop.f32.mrf.mxu0
        %v455 = vadd.f32 0.0, %v454
        %456 = vdwg.mxu0
        %457 = vst [vmem:[%s273] sm:$0xff] %v439
        %458 = vst [vmem:[%s273 + $0x8] sm:$0xff] %v441
        %459 = vst [vmem:[%s273 + $0x10] sm:$0xff] %v443
        %460 = vst [vmem:[%s273 + $0x18] sm:$0xff] %v445
        %461 = vst [vmem:[%s273 + $0x20] sm:$0xff] %v449
        %462 = vst [vmem:[%s273 + $0x28] sm:$0xff] %v451
        %463 = vst [vmem:[%s273 + $0x30] sm:$0xff] %v453
        %464 = vst [vmem:[%s273 + $0x38] sm:$0xff] %v455
        %s465 = sand.u32 %s116, 1
        %s466 = scalar_lea.sflag [#allocation4], %s465
        %s467 = sand.u32 %s116, 1
        %s468 = smul.addr %s467, 64
        %s469 = scalar_lea.vmem [#allocation8], %s468
        %s470 = sand.u32 %s144, 1
        %s471 = scalar_lea.sflag [#allocation10], %s470
        %s472 = sand.u32 %s144, 1
        %s473 = smul.addr %s472, 64
        %s474 = scalar_lea.vmem [#allocation9], %s473
        // Predicated region
        $region45: #{tpu_custom_call.1} parent=31 // pred_check
          %p475 = pneg %p126
        $region46: #{tpu_custom_call.1} parent=31 // pred_check_branch
          %477 = sbr.rel (%p475) target = $region48
        $region47: #{tpu_custom_call.1} parent=31 // pred_region
          %s478 = smul.u32 2, %s29
          %s480 = ssub.s32 1024, 1024
          %481 = vsyncadd %s466, %s480
          %s482 = smul.addr %s28, 8
          %s483 = sadd.s32 %s478, %s482
          %s484 = smul.addr %s483, 128
          %s485 = scalar_lea.hbm %s3, %s484
          %s486 = sshll.u32 %s469, 4
          %s487 = int_to_ptr.vmem [resolvable:$true] %s486
          %492 = dma.vmem_to_hbm [thread:$0]  %s487, 1024, %s485, %s466, 256, 256, 16
        $region48: #{tpu_custom_call.1} parent=31 // pred_fallthru
          _
        // Predicated region
        $region49: #{tpu_custom_call.1} parent=31 // pred_check
          %p493 = pneg %p154
        $region50: #{tpu_custom_call.1} parent=31 // pred_check_branch
          %495 = sbr.rel (%p493) target = $region52
        $region51: #{tpu_custom_call.1} parent=31 // pred_region
          %s496 = smul.u32 2, %s29
          %s498 = ssub.s32 1024, 1024
          %499 = vsyncadd %s471, %s498
          %s500 = smul.addr %s28, 8
          %s501 = sadd.s32 %s496, %s500
          %s502 = smul.addr %s501, 128
          %s503 = scalar_lea.hbm %s4, %s502
          %s504 = sshll.u32 %s474, 4
          %s505 = int_to_ptr.vmem [resolvable:$true] %s504
          %510 = dma.vmem_to_hbm [thread:$0]  %s505, 1024, %s503, %s471, 256, 256, 16
        $region52: #{tpu_custom_call.1} parent=31 // pred_fallthru
          _
      $region32: #{tpu_custom_call.1} parent=5 // pred_fallthru
        _
      %p511 = scmp.le.s32.totalorder 2, %s19
      // Predicated region
      $region53: #{tpu_custom_call.1} parent=5 // pred_check
        %p512 = pneg %p511
      $region54: #{tpu_custom_call.1} parent=5 // pred_check_branch
        %514 = sbr.rel (%p512) target = $region56
      $region55: #{tpu_custom_call.1} parent=5 // pred_region
        %s515 = ssub.s32 %s19, 2
        // Predicated region
        $region57: #{tpu_custom_call.1} parent=55 // pred_check
          %p516 = pneg %p132
        $region58: #{tpu_custom_call.1} parent=55 // pred_check_branch
          %518 = sbr.rel (%p516) target = $region60
        $region59: #{tpu_custom_call.1} parent=55 // pred_region
          %s519 = sand.u32 %s117, 1
          %s520 = scalar_lea.sflag [#allocation4], %s519
          %s521 = sand.u32 %s117, 1
          %s522 = smul.addr %s521, 64
          %s523 = scalar_lea.vmem [#allocation8], %s522
          %524 = dma.done %s520, 1024
        $region60: #{tpu_custom_call.1} parent=55 // pred_fallthru
          _
        // Predicated region
        $region61: #{tpu_custom_call.1} parent=55 // pred_check
          %p525 = pneg %p160
        $region62: #{tpu_custom_call.1} parent=55 // pred_check_branch
          %527 = sbr.rel (%p525) target = $region64
        $region63: #{tpu_custom_call.1} parent=55 // pred_region
          %s528 = sand.u32 %s145, 1
          %s529 = scalar_lea.sflag [#allocation10], %s528
          %s530 = sand.u32 %s145, 1
          %s531 = smul.addr %s530, 64
          %s532 = scalar_lea.vmem [#allocation9], %s531
          %533 = dma.done %s529, 1024
        $region64: #{tpu_custom_call.1} parent=55 // pred_fallthru
          _
      $region56: #{tpu_custom_call.1} parent=5 // pred_fallthru
        _
    $region6: #{tpu_custom_call.1} parent=1 // loop_footer
      %s23 = sadd.s32 1, %s19
    $region7: #{tpu_custom_call.1} parent=1 // loop_footer_branch
      %18 = sbr.rel target = $region3
    $region8: #{tpu_custom_call.1} parent=1 // loop_exit
      _
    %534 = vsyncpa [#allocation3], 1
    %s535 = scalar_lea.sflag [#allocation3], 1
    %536 = vsyncpa %s535, 1
    %537 = vsyncpa [#allocation6], 1
    %538 = vsyncpa [#allocation4], 1
    %s539 = scalar_lea.sflag [#allocation4], 1
    %540 = vsyncpa %s539, 1
    %541 = vsyncpa [#allocation10], 1
    %s542 = scalar_lea.sflag [#allocation10], 1
    %543 = vsyncpa %s542, 1

// kernel: tpu_custom_call.1
$region0: #{tpu_custom_call.1}
  #allocation0 [shape = 'u32[]', space=smem, size = 0x4, offset = 0x4, fixed_abs, tag = 'smem constant byte address 0x4 - core index']
  #allocation1 [shape = 'u32[144,128]{1,0:T(1,128)}', space=vmem, size = 0x12000, scoped, tag = 'internal scratch']
  %s0 = inlined_call_operand.hbm [shape: bf16[32,32], index: 0, kind: input, shape index: {}]
  %s1 = inlined_call_operand.hbm [shape: bf16[32,32], index: 1, kind: input, shape index: {}]
  %s2 = inlined_call_operand.hbm [shape: bf16[4,32,256], index: 2, kind: input, shape index: {}]
  %s3 = inlined_call_operand.hbm [shape: f32[4,32,256], index: 3, kind: output, shape index: {0}]
  %s4 = inlined_call_operand.hbm [shape: f32[4,32,256], index: 4, kind: output, shape index: {1}]
  %5 = xla_tuple %s3, %s4
  %s6 = sld [smem:[#allocation0]]
  $region65: #{tpu_custom_call.1} parent=0
    _
  %s8 = ssub.s32 1, %s6
  %s9 = scalar_select 0, %s8, %s6
  $region1: #{tpu_custom_call.1} parent=0
    #allocation2 [shape = 'u8[8192]{0}', space=vmem, size = 0x2000, scoped, tag = 'input window, operand 0, single buffered']
    #allocation3 [shape = 's32[2]{0}', space=sflag, size = 0x8, scoped, tag = 'scoped memory for tpu_custom_call.1']
    #allocation4 [shape = 's32[2]{0}', space=sflag, size = 0x8, scoped, tag = 'scoped memory for tpu_custom_call.1']
    #allocation5 [shape = 'u8[8192]{0}', space=vmem, size = 0x2000, scoped, tag = 'input window, operand 1, single buffered']
    #allocation6 [shape = 's32[1]{0}', space=sflag, size = 0x4, scoped, tag = 'scoped memory for tpu_custom_call.1']
    #allocation7 [shape = 'u8[32768]{0}', space=vmem, size = 0x8000, scoped, tag = 'input window, operand 2']
    #allocation8 [shape = 'u8[65536]{0}', space=vmem, size = 0x10000, scoped, tag = 'output window, operand 0']
    #allocation9 [shape = 'u8[65536]{0}', space=vmem, size = 0x10000, scoped, tag = 'output window, operand 1']
    #allocation10 [shape = 's32[2]{0}', space=sflag, size = 0x8, scoped, tag = 'scoped memory for tpu_custom_call.1']
    %10 = vsyncpa [#allocation3], 0
    %11 = vsyncpa [#allocation6], 0
    %12 = vsyncpa [#allocation4], 0
    %s13 = scalar_lea.sflag [#allocation4], 1
    %14 = vsyncpa %s13, 0
    %15 = vsyncpa [#allocation10], 0
    %s16 = scalar_lea.sflag [#allocation10], 1
    %17 = vsyncpa %s16, 0
    loop: start=0, step=1, limit=6
    $region2: #{tpu_custom_call.1} parent=1 // loop_pre_header
      _
    $region3: #{tpu_custom_call.1} parent=1 // loop_header
      %s19 = sphi 0, %s23
      %p20 = scmp.ge.s32.totalorder %s19, 6
      %s26 = sphi 0, %s38
      %s27 = sphi 0, %s34
      %s28 = sphi 0, %s26
      %s29 = sphi 0, %s27
      %s30 = sphi 0, %s28
      %s31 = sphi 0, %s29
      %s39 = sphi 0, %s39
      %s41 = sphi 0, %s39
      %s42 = sphi 0, %s41
      %s56 = sphi 0, %s42
      %s60 = sphi 0, %s60
      %s62 = sphi 0, %s60
      %s63 = sphi 0, %s62
      %s77 = sphi 0, %s63
      %s85 = sphi 0, %s87
      %s88 = sphi 0, %s85
      %s89 = sphi 0, %s88
      %s105 = sphi 0, %s89
      %s113 = sphi 0, %s115
      %s116 = sphi 0, %s113
      %s117 = sphi 0, %s116
      %s133 = sphi 0, %s117
      %s141 = sphi 0, %s143
      %s144 = sphi 0, %s141
      %s145 = sphi 0, %s144
      %s161 = sphi 0, %s145
    $region4: #{tpu_custom_call.1} parent=1 // loop_header_branch
      %22 = sbr.rel (%p20) target = $region8
    $region5: #{tpu_custom_call.1} parent=1 // loop_body
      %s24 = ssub.s32 %s19, 1
      %s25 = ssub.s32 %s19, 2
      %s32 = sadd.s32 1, %s27
      %p33 = scmp.ge.s32.totalorder %s32, 1
      %s34 = scalar_select %p33, 0, %s32
      %s35 = sadd.s32 1, %s26
      %s36 = scalar_select %p33, %s35, %s26
      %p37 = scmp.ge.s32.totalorder %s36, 4
      %s38 = scalar_select %p37, 0, %s36
      %s40 = sadd.s32 %s39, 1
      %p43 = scmp.eq.s32.totalorder %s19, 3
      %p44 = scmp.ne.s32.totalorder %s39, %s41
      %p45 = scmp.eq.s32.totalorder %s19, 0
      %p46 = por %p44, %p45
      %p47 = scmp.ne.s32.totalorder %s39, %s41
      %p48 = scmp.eq.s32.totalorder %s24, 3
      %p49 = por %p47, %p48
      %p50 = scmp.ne.s32.totalorder %s41, %s42
      %p51 = scmp.eq.s32.totalorder %s24, 0
      %p52 = por %p50, %p51
      %p53 = scmp.ne.s32.totalorder %s41, %s42
      %p54 = scmp.eq.s32.totalorder %s25, 3
      %p55 = por %p53, %p54
      %p57 = scmp.ne.s32.totalorder %s42, %s56
      %p58 = scmp.eq.s32.totalorder %s25, 0
      %p59 = por %p57, %p58
      %s61 = sadd.s32 %s60, 1
      %p64 = scmp.eq.s32.totalorder %s19, 3
      %p65 = scmp.ne.s32.totalorder %s60, %s62
      %p66 = scmp.eq.s32.totalorder %s19, 0
      %p67 = por %p65, %p66
      %p68 = scmp.ne.s32.totalorder %s60, %s62
      %p69 = scmp.eq.s32.totalorder %s24, 3
      %p70 = por %p68, %p69
      %p71 = scmp.ne.s32.totalorder %s62, %s63
      %p72 = scmp.eq.s32.totalorder %s24, 0
      %p73 = por %p71, %p72
      %p74 = scmp.ne.s32.totalorder %s62, %s63
      %p75 = scmp.eq.s32.totalorder %s25, 3
      %p76 = por %p74, %p75
      %p78 = scmp.ne.s32.totalorder %s63, %s77
      %p79 = scmp.eq.s32.totalorder %s25, 0
      %p80 = por %p78, %p79
      %s81 = ssub.s32 %s26, %s38
      %s82 = ssub.s32 %s27, %s34
      %s83 = sor.u32 %s81, %s82
      %p84 = scmp.eq.s32.totalorder %s83, 0
      %s86 = sadd.s32 %s85, 1
      %s87 = scalar_select %p84, %s85, %s86
      %p90 = pneg %p84
      %p91 = scmp.eq.s32.totalorder %s19, 3
      %p92 = por %p90, %p91
      %p93 = scmp.ne.s32.totalorder %s85, %s88
      %p94 = scmp.eq.s32.totalorder %s19, 0
      %p95 = por %p93, %p94
      %p96 = scmp.ne.s32.totalorder %s85, %s88
      %p97 = scmp.eq.s32.totalorder %s24, 3
      %p98 = por %p96, %p97
      %p99 = scmp.ne.s32.totalorder %s88, %s89
      %p100 = scmp.eq.s32.totalorder %s24, 0
      %p101 = por %p99, %p100
      %p102 = scmp.ne.s32.totalorder %s88, %s89
      %p103 = scmp.eq.s32.totalorder %s25, 3
      %p104 = por %p102, %p103
      %p106 = scmp.ne.s32.totalorder %s89, %s105
      %p107 = scmp.eq.s32.totalorder %s25, 0
      %p108 = por %p106, %p107
      %s109 = ssub.s32 %s26, %s38
      %s110 = ssub.s32 %s27, %s34
      %s111 = sor.u32 %s109, %s110
      %p112 = scmp.eq.s32.totalorder %s111, 0
      %s114 = sadd.s32 %s113, 1
      %s115 = scalar_select %p112, %s113, %s114
      %p118 = pneg %p112
      %p119 = scmp.eq.s32.totalorder %s19, 3
      %p120 = por %p118, %p119
      %p121 = scmp.ne.s32.totalorder %s113, %s116
      %p122 = scmp.eq.s32.totalorder %s19, 0
      %p123 = por %p121, %p122
      %p124 = scmp.ne.s32.totalorder %s113, %s116
      %p125 = scmp.eq.s32.totalorder %s24, 3
      %p126 = por %p124, %p125
      %p127 = scmp.ne.s32.totalorder %s116, %s117
      %p128 = scmp.eq.s32.totalorder %s24, 0
      %p129 = por %p127, %p128
      %p130 = scmp.ne.s32.totalorder %s116, %s117
      %p131 = scmp.eq.s32.totalorder %s25, 3
      %p132 = por %p130, %p131
      %p134 = scmp.ne.s32.totalorder %s117, %s133
      %p135 = scmp.eq.s32.totalorder %s25, 0
      %p136 = por %p134, %p135
      %s137 = ssub.s32 %s26, %s38
      %s138 = ssub.s32 %s27, %s34
      %s139 = sor.u32 %s137, %s138
      %p140 = scmp.eq.s32.totalorder %s139, 0
      %s142 = sadd.s32 %s141, 1
      %s143 = scalar_select %p140, %s141, %s142
      %p146 = pneg %p140
      %p147 = scmp.eq.s32.totalorder %s19, 3
      %p148 = por %p146, %p147
      %p149 = scmp.ne.s32.totalorder %s141, %s144
      %p150 = scmp.eq.s32.totalorder %s19, 0
      %p151 = por %p149, %p150
      %p152 = scmp.ne.s32.totalorder %s141, %s144
      %p153 = scmp.eq.s32.totalorder %s24, 3
      %p154 = por %p152, %p153
      %p155 = scmp.ne.s32.totalorder %s144, %s145
      %p156 = scmp.eq.s32.totalorder %s24, 0
      %p157 = por %p155, %p156
      %p158 = scmp.ne.s32.totalorder %s144, %s145
      %p159 = scmp.eq.s32.totalorder %s25, 3
      %p160 = por %p158, %p159
      %p162 = scmp.ne.s32.totalorder %s145, %s161
      %p163 = scmp.eq.s32.totalorder %s25, 0
      %p164 = por %p162, %p163
      %p165 = scmp.le.s32.totalorder 1, %s19
      %p166 = scmp.lt.s32.totalorder %s19, 5
      %p167 = pnand %p165, %p166
      %p168 = pneg %p167
      // Predicated region
      $region9: #{tpu_custom_call.1} parent=5 // pred_check
        _
      $region10: #{tpu_custom_call.1} parent=5 // pred_check_branch
        %170 = sbr.rel (%p167) target = $region12
      $region11: #{tpu_custom_call.1} parent=5 // pred_region
        %s171 = ssub.s32 %s19, 1
        // Predicated region
        $region13: #{tpu_custom_call.1} parent=11 // pred_check
          %p172 = pneg %p52
        $region14: #{tpu_custom_call.1} parent=11 // pred_check_branch
          %174 = sbr.rel (%p172) target = $region16
        $region15: #{tpu_custom_call.1} parent=11 // pred_region
          %s176 = ssub.s32 256, 256
          %177 = vsyncadd [#allocation3], %s176
          %s178 = sshll.u32 [#allocation2], 4
          %s179 = int_to_ptr.vmem [resolvable:$true] %s178
          %184 = dma.hbm_to_vmem [thread:$0]  %s0, 256, %s179, [#allocation3], 64, 64, 4
        $region16: #{tpu_custom_call.1} parent=11 // pred_fallthru
          _
        // Predicated region
        $region17: #{tpu_custom_call.1} parent=11 // pred_check
          %p185 = pneg %p73
        $region18: #{tpu_custom_call.1} parent=11 // pred_check_branch
          %187 = sbr.rel (%p185) target = $region20
        $region19: #{tpu_custom_call.1} parent=11 // pred_region
          %s189 = ssub.s32 256, 256
          %190 = vsyncadd [#allocation6], %s189
          %s191 = sshll.u32 [#allocation5], 4
          %s192 = int_to_ptr.vmem [resolvable:$true] %s191
          %197 = dma.hbm_to_vmem [thread:$0]  %s1, 256, %s192, [#allocation6], 64, 64, 4
        $region20: #{tpu_custom_call.1} parent=11 // pred_fallthru
          _
      $region12: #{tpu_custom_call.1} parent=5 // pred_fallthru
        _
      %p198 = scmp.lt.s32.totalorder %s19, 4
      // Predicated region
      $region21: #{tpu_custom_call.1} parent=5 // pred_check
        %p199 = pneg %p198
      $region22: #{tpu_custom_call.1} parent=5 // pred_check_branch
        %201 = sbr.rel (%p199) target = $region24
      $region23: #{tpu_custom_call.1} parent=5 // pred_region
        // Predicated region
        $region25: #{tpu_custom_call.1} parent=23 // pred_check
          %p202 = pneg %p95
        $region26: #{tpu_custom_call.1} parent=23 // pred_check_branch
          %204 = sbr.rel (%p202) target = $region28
        $region27: #{tpu_custom_call.1} parent=23 // pred_region
          %s205 = sand.u32 %s19, 1
          %s206 = scalar_lea.sflag [#allocation3], %s205
          %s207 = sand.u32 %s85, 1
          %s208 = smul.addr %s207, 32
          %s209 = scalar_lea.vmem [#allocation7], %s208
          %s210 = smul.u32 2, %s27
          %s212 = ssub.s32 512, 512
          %213 = vsyncadd %s206, %s212
          %s214 = smul.addr %s26, 8
          %s215 = sadd.s32 %s210, %s214
          %s216 = smul.addr %s215, 64
          %s217 = scalar_lea.hbm %s2, %s216
          %s218 = sshll.u32 %s209, 4
          %s219 = int_to_ptr.vmem [resolvable:$true] %s218
          %224 = dma.hbm_to_vmem [thread:$0]  %s217, 512, %s219, %s206, 128, 128, 8
        $region28: #{tpu_custom_call.1} parent=23 // pred_fallthru
          _
      $region24: #{tpu_custom_call.1} parent=5 // pred_fallthru
        _
      %p225 = scmp.le.s32.totalorder 1, %s19
      %p226 = scmp.lt.s32.totalorder %s19, 5
      %p227 = pnand %p225, %p226
      %p228 = pneg %p227
      // Predicated region
      $region29: #{tpu_custom_call.1} parent=5 // pred_check
        _
      $region30: #{tpu_custom_call.1} parent=5 // pred_check_branch
        %230 = sbr.rel (%p227) target = $region32
      $region31: #{tpu_custom_call.1} parent=5 // pred_region
        %s231 = ssub.s32 %s19, 1
        // Predicated region
        $region33: #{tpu_custom_call.1} parent=31 // pred_check
          %p232 = pneg %p52
        $region34: #{tpu_custom_call.1} parent=31 // pred_check_branch
          %234 = sbr.rel (%p232) target = $region36
        $region35: #{tpu_custom_call.1} parent=31 // pred_region
          %235 = dma.done [#allocation3], 256
        $region36: #{tpu_custom_call.1} parent=31 // pred_fallthru
          _
        // Predicated region
        $region37: #{tpu_custom_call.1} parent=31 // pred_check
          %p236 = pneg %p73
        $region38: #{tpu_custom_call.1} parent=31 // pred_check_branch
          %238 = sbr.rel (%p236) target = $region40
        $region39: #{tpu_custom_call.1} parent=31 // pred_region
          %239 = dma.done [#allocation6], 256
        $region40: #{tpu_custom_call.1} parent=31 // pred_fallthru
          _
        %s240 = sand.u32 %s24, 1
        %s241 = scalar_lea.sflag [#allocation3], %s240
        %s242 = sand.u32 %s88, 1
        %s243 = smul.addr %s242, 32
        %s244 = scalar_lea.vmem [#allocation7], %s243
        // Predicated region
        $region41: #{tpu_custom_call.1} parent=31 // pred_check
          %p245 = pneg %p101
        $region42: #{tpu_custom_call.1} parent=31 // pred_check_branch
          %247 = sbr.rel (%p245) target = $region44
        $region43: #{tpu_custom_call.1} parent=31 // pred_region
          %248 = dma.done %s241, 512
        $region44: #{tpu_custom_call.1} parent=31 // pred_fallthru
          _
        %p249 = pneg %p52
        %p250 = pneg %p49
        %p251 = pneg %p73
        %p252 = pneg %p70
        %s253 = sand.u32 %s24, 1
        %s254 = scalar_lea.sflag [#allocation3], %s253
        %s255 = sand.u32 %s88, 1
        %s256 = smul.addr %s255, 32
        %s257 = scalar_lea.vmem [#allocation7], %s256
        %p258 = pneg %p101
        %p259 = pneg %p98
        %p260 = pneg %p129
        %p261 = pneg %p126
        %s262 = sand.u32 %s116, 1
        %s263 = scalar_lea.sflag [#allocation4], %s262
        %s264 = sand.u32 %s116, 1
        %s265 = smul.addr %s264, 64
        %s266 = scalar_lea.vmem [#allocation8], %s265
        %p267 = pneg %p157
        %p268 = pneg %p154
        %s269 = sand.u32 %s144, 1
        %s270 = scalar_lea.sflag [#allocation10], %s269
        %s271 = sand.u32 %s144, 1
        %s272 = smul.addr %s271, 64
        %s273 = scalar_lea.vmem [#allocation9], %s272
        %s274 = smul.u32 2, %s29
        %s275 = smul.u32 2, %s29
        %s276 = smul.u32 2, %s29
        %v278 = vld [vmem:[%s244] sm:$0xff]
        %v279 = vld [vmem:[%s244 + $0x8] sm:$0xff]
        %v280 = vld [vmem:[%s244 + $0x10] sm:$0xff]
        %v281 = vld [vmem:[%s244 + $0x18] sm:$0xff]
        %v282 = vld [vmem:[#allocation2] sm:$0xf]
        %v283 = vld [vmem:[#allocation2 + $0x4] sm:$0xf]
        %v284 = vld [vmem:[#allocation2 + $0x8] sm:$0xf]
        %v285 = vld [vmem:[#allocation2 + $0xc] sm:$0xf]
        %v290 = vunpack.c.l.b16 %v282
        %v291 = vunpack.c.l.b16 %v283
        %v292 = vunpack.c.l.b16 %v284
        %v293 = vunpack.c.l.b16 %v285
        %v294 = vpack.c.b16 %v291, %v290
        %v295 = vpack.c.b16 %v293, %v292
        %v300 = vunpack.c.l.b16 %v278
        %v301 = vunpack.c.h.b16 %v278
        %v302 = vunpack.c.l.b16 %v279
        %v303 = vunpack.c.h.b16 %v279
        %v304 = vunpack.c.l.b16 %v280
        %v305 = vunpack.c.h.b16 %v280
        %v306 = vunpack.c.l.b16 %v281
        %v307 = vunpack.c.h.b16 %v281
        %v308 = vpack.c.b16 %v302, %v300
        %v309 = vpack.c.b16 %v303, %v301
        %v310 = vpack.c.b16 %v306, %v304
        %v311 = vpack.c.b16 %v307, %v305
        %vm316 = vcmask 261120
        %v318 = vsel %vm316, %v294, 0
        %v321 = vsel %vm316, %v295, 0
        %323 = vmatprep.subr.bf16.mxu0 0
        %324 = vmatpush1.bf16.msra.mxu0 0
        %325 = vmatprep.subr.bf16.mxu0 0
        %326 = vmatpush1.bf16.msra.mxu0 0
        %327 = vmatprep.subr.bf16.mxu0 0
        %328 = vmatpush1.bf16.msra.mxu0 0
        %329 = vmatprep.subr.bf16.mxu0 0
        %330 = vmatpush1.bf16.msra.mxu0 0
        %331 = vmatprep.subr.bf16.mxu0 0
        %332 = vmatpush1.bf16.msra.mxu0 0
        %333 = vmatprep.subr.bf16.mxu0 0
        %334 = vmatpush1.bf16.msra.mxu0 0
        %335 = vmatprep.subr.bf16.mxu0 %v311
        %336 = vmatpush1.bf16.msra.mxu0 %v310
        %337 = vmatprep.subr.bf16.mxu0 %v309
        %338 = vmatpush1.bf16.msra.mxu0 %v308
        %339 = vmatprep.subr.bf16.mxu0 0
        %340 = vmatpush2.bf16.msra.mxu0 0
        %341 = vmatprep.subr.bf16.mxu0 0
        %342 = vmatpush2.bf16.msra.mxu0 0
        %343 = vmatprep.subr.bf16.mxu0 0
        %344 = vmatpush2.bf16.msra.mxu0 0
        %345 = vmatprep.subr.bf16.mxu0 0
        %346 = vmatpush2.bf16.msra.mxu0 0
        %347 = vmatprep.subr.bf16.mxu0 0
        %348 = vmatpush2.bf16.msra.mxu0 0
        %349 = vmatprep.subr.bf16.mxu0 0
        %350 = vmatpush2.bf16.msra.mxu0 0
        %351 = vmatprep.subr.bf16.mxu0 0
        %352 = vmatpush2.bf16.msra.mxu0 0
        %353 = vmatprep.subr.bf16.mxu0 0
        %354 = vmatpush2.bf16.msra.mxu0 0
        %355 = vmatprep.mubr.bf16.mxu0 0
        %356 = vmatmul.mubr.bf16.gmra.mxu0 %v318
        %v357 = vpop.f32.mrf.mxu0
        %v358 = vadd.f32 0.0, %v357
        %v359 = vpop.f32.mrf.mxu0
        %v360 = vadd.f32 0.0, %v359
        %v361 = vpop.f32.mrf.mxu0
        %v362 = vadd.f32 0.0, %v361
        %v363 = vpop.f32.mrf.mxu0
        %v364 = vadd.f32 0.0, %v363
        %365 = vmatprep.mubr.bf16.mxu0 0
        %366 = vmatmul.mubr.bf16.gmra.mxu0 %v321
        %v367 = vpop.f32.mrf.mxu0
        %v368 = vadd.f32 0.0, %v367
        %v369 = vpop.f32.mrf.mxu0
        %v370 = vadd.f32 0.0, %v369
        %v371 = vpop.f32.mrf.mxu0
        %v372 = vadd.f32 0.0, %v371
        %v373 = vpop.f32.mrf.mxu0
        %v374 = vadd.f32 0.0, %v373
        %375 = vdwg.mxu0
        %376 = vst [vmem:[%s266] sm:$0xff] %v358
        %377 = vst [vmem:[%s266 + $0x8] sm:$0xff] %v360
        %378 = vst [vmem:[%s266 + $0x10] sm:$0xff] %v362
        %379 = vst [vmem:[%s266 + $0x18] sm:$0xff] %v364
        %380 = vst [vmem:[%s266 + $0x20] sm:$0xff] %v368
        %381 = vst [vmem:[%s266 + $0x28] sm:$0xff] %v370
        %382 = vst [vmem:[%s266 + $0x30] sm:$0xff] %v372
        %383 = vst [vmem:[%s266 + $0x38] sm:$0xff] %v374
        %v384 = vld [vmem:[#allocation5] sm:$0xf]
        %v385 = vld [vmem:[#allocation5 + $0x4] sm:$0xf]
        %v386 = vld [vmem:[#allocation5 + $0x8] sm:$0xf]
        %v387 = vld [vmem:[#allocation5 + $0xc] sm:$0xf]
        %v392 = vunpack.c.l.b16 %v384
        %v393 = vunpack.c.l.b16 %v385
        %v394 = vunpack.c.l.b16 %v386
        %v395 = vunpack.c.l.b16 %v387
        %v396 = vpack.c.b16 %v393, %v392
        %v397 = vpack.c.b16 %v395, %v394
        %v399 = vsel %vm316, %v396, 0
        %v402 = vsel %vm316, %v397, 0
        %404 = vmatprep.subr.bf16.mxu0 0
        %405 = vmatpush1.bf16.msra.mxu0 0
        %406 = vmatprep.subr.bf16.mxu0 0
        %407 = vmatpush1.bf16.msra.mxu0 0
        %408 = vmatprep.subr.bf16.mxu0 0
        %409 = vmatpush1.bf16.msra.mxu0 0
        %410 = vmatprep.subr.bf16.mxu0 0
        %411 = vmatpush1.bf16.msra.mxu0 0
        %412 = vmatprep.subr.bf16.mxu0 0
        %413 = vmatpush1.bf16.msra.mxu0 0
        %414 = vmatprep.subr.bf16.mxu0 0
        %415 = vmatpush1.bf16.msra.mxu0 0
        %416 = vmatprep.subr.bf16.mxu0 %v311
        %417 = vmatpush1.bf16.msra.mxu0 %v310
        %418 = vmatprep.subr.bf16.mxu0 %v309
        %419 = vmatpush1.bf16.msra.mxu0 %v308
        %420 = vmatprep.subr.bf16.mxu0 0
        %421 = vmatpush2.bf16.msra.mxu0 0
        %422 = vmatprep.subr.bf16.mxu0 0
        %423 = vmatpush2.bf16.msra.mxu0 0
        %424 = vmatprep.subr.bf16.mxu0 0
        %425 = vmatpush2.bf16.msra.mxu0 0
        %426 = vmatprep.subr.bf16.mxu0 0
        %427 = vmatpush2.bf16.msra.mxu0 0
        %428 = vmatprep.subr.bf16.mxu0 0
        %429 = vmatpush2.bf16.msra.mxu0 0
        %430 = vmatprep.subr.bf16.mxu0 0
        %431 = vmatpush2.bf16.msra.mxu0 0
        %432 = vmatprep.subr.bf16.mxu0 0
        %433 = vmatpush2.bf16.msra.mxu0 0
        %434 = vmatprep.subr.bf16.mxu0 0
        %435 = vmatpush2.bf16.msra.mxu0 0
        %436 = vmatprep.mubr.bf16.mxu0 0
        %437 = vmatmul.mubr.bf16.gmra.mxu0 %v399
        %v438 = vpop.f32.mrf.mxu0
        %v439 = vadd.f32 0.0, %v438
        %v440 = vpop.f32.mrf.mxu0
        %v441 = vadd.f32 0.0, %v440
        %v442 = vpop.f32.mrf.mxu0
        %v443 = vadd.f32 0.0, %v442
        %v444 = vpop.f32.mrf.mxu0
        %v445 = vadd.f32 0.0, %v444
        %446 = vmatprep.mubr.bf16.mxu0 0
        %447 = vmatmul.mubr.bf16.gmra.mxu0 %v402
        %v448 = vpop.f32.mrf.mxu0
        %v449 = vadd.f32 0.0, %v448
        %v450 = vpop.f32.mrf.mxu0
        %v451 = vadd.f32 0.0, %v450
        %v452 = vpop.f32.mrf.mxu0
        %v453 = vadd.f32 0.0, %v452
        %v454 = vpop.f32.mrf.mxu0
        %v455 = vadd.f32 0.0, %v454
        %456 = vdwg.mxu0
        %457 = vst [vmem:[%s273] sm:$0xff] %v439
        %458 = vst [vmem:[%s273 + $0x8] sm:$0xff] %v441
        %459 = vst [vmem:[%s273 + $0x10] sm:$0xff] %v443
        %460 = vst [vmem:[%s273 + $0x18] sm:$0xff] %v445
        %461 = vst [vmem:[%s273 + $0x20] sm:$0xff] %v449
        %462 = vst [vmem:[%s273 + $0x28] sm:$0xff] %v451
        %463 = vst [vmem:[%s273 + $0x30] sm:$0xff] %v453
        %464 = vst [vmem:[%s273 + $0x38] sm:$0xff] %v455
        %s465 = sand.u32 %s116, 1
        %s466 = scalar_lea.sflag [#allocation4], %s465
        %s467 = sand.u32 %s116, 1
        %s468 = smul.addr %s467, 64
        %s469 = scalar_lea.vmem [#allocation8], %s468
        %s470 = sand.u32 %s144, 1
        %s471 = scalar_lea.sflag [#allocation10], %s470
        %s472 = sand.u32 %s144, 1
        %s473 = smul.addr %s472, 64
        %s474 = scalar_lea.vmem [#allocation9], %s473
        // Predicated region
        $region45: #{tpu_custom_call.1} parent=31 // pred_check
          %p475 = pneg %p126
        $region46: #{tpu_custom_call.1} parent=31 // pred_check_branch
          %477 = sbr.rel (%p475) target = $region48
        $region47: #{tpu_custom_call.1} parent=31 // pred_region
          %s478 = smul.u32 2, %s29
          %s480 = ssub.s32 1024, 1024
          %481 = vsyncadd %s466, %s480
          %s482 = smul.addr %s28, 8
          %s483 = sadd.s32 %s478, %s482
          %s484 = smul.addr %s483, 128
          %s485 = scalar_lea.hbm %s3, %s484
          %s486 = sshll.u32 %s469, 4
          %s487 = int_to_ptr.vmem [resolvable:$true] %s486
          %492 = dma.vmem_to_hbm [thread:$0]  %s487, 1024, %s485, %s466, 256, 256, 16
        $region48: #{tpu_custom_call.1} parent=31 // pred_fallthru
          _
        // Predicated region
        $region49: #{tpu_custom_call.1} parent=31 // pred_check
          %p493 = pneg %p154
        $region50: #{tpu_custom_call.1} parent=31 // pred_check_branch
          %495 = sbr.rel (%p493) target = $region52
        $region51: #{tpu_custom_call.1} parent=31 // pred_region
          %s496 = smul.u32 2, %s29
          %s498 = ssub.s32 1024, 1024
          %499 = vsyncadd %s471, %s498
          %s500 = smul.addr %s28, 8
          %s501 = sadd.s32 %s496, %s500
          %s502 = smul.addr %s501, 128
          %s503 = scalar_lea.hbm %s4, %s502
          %s504 = sshll.u32 %s474, 4
          %s505 = int_to_ptr.vmem [resolvable:$true] %s504
          %510 = dma.vmem_to_hbm [thread:$0]  %s505, 1024, %s503, %s471, 256, 256, 16
        $region52: #{tpu_custom_call.1} parent=31 // pred_fallthru
          _
      $region32: #{tpu_custom_call.1} parent=5 // pred_fallthru
        _
      %p511 = scmp.le.s32.totalorder 2, %s19
      // Predicated region
      $region53: #{tpu_custom_call.1} parent=5 // pred_check
        %p512 = pneg %p511
      $region54: #{tpu_custom_call.1} parent=5 // pred_check_branch
        %514 = sbr.rel (%p512) target = $region56
      $region55: #{tpu_custom_call.1} parent=5 // pred_region
        %s515 = ssub.s32 %s19, 2
        // Predicated region
        $region57: #{tpu_custom_call.1} parent=55 // pred_check
          %p516 = pneg %p132
        $region58: #{tpu_custom_call.1} parent=55 // pred_check_branch
          %518 = sbr.rel (%p516) target = $region60
        $region59: #{tpu_custom_call.1} parent=55 // pred_region
          %s519 = sand.u32 %s117, 1
          %s520 = scalar_lea.sflag [#allocation4], %s519
          %s521 = sand.u32 %s117, 1
          %s522 = smul.addr %s521, 64
          %s523 = scalar_lea.vmem [#allocation8], %s522
          %524 = dma.done %s520, 1024
        $region60: #{tpu_custom_call.1} parent=55 // pred_fallthru
          _
        // Predicated region
        $region61: #{tpu_custom_call.1} parent=55 // pred_check
          %p525 = pneg %p160
        $region62: #{tpu_custom_call.1} parent=55 // pred_check_branch
          %527 = sbr.rel (%p525) target = $region64
        $region63: #{tpu_custom_call.1} parent=55 // pred_region
          %s528 = sand.u32 %s145, 1
          %s529 = scalar_lea.sflag [#allocation10], %s528
          %s530 = sand.u32 %s145, 1
          %s531 = smul.addr %s530, 64
          %s532 = scalar_lea.vmem [#allocation9], %s531
          %533 = dma.done %s529, 1024
        $region64: #{tpu_custom_call.1} parent=55 // pred_fallthru
          _
      $region56: #{tpu_custom_call.1} parent=5 // pred_fallthru
        _
    $region6: #{tpu_custom_call.1} parent=1 // loop_footer
      %s23 = sadd.s32 1, %s19
    $region7: #{tpu_custom_call.1} parent=1 // loop_footer_branch
      %18 = sbr.rel target = $region3
    $region8: #{tpu_custom_call.1} parent=1 // loop_exit
      _
    %534 = vsyncpa [#allocation3], 1
    %s535 = scalar_lea.sflag [#allocation3], 1
    %536 = vsyncpa %s535, 1
    %537 = vsyncpa [#allocation6], 1
    %538 = vsyncpa [#allocation4], 1
    %s539 = scalar_lea.sflag [#allocation4], 1
    %540 = vsyncpa %s539, 1
    %541 = vsyncpa [#allocation10], 1
    %s542 = scalar_lea.sflag [#allocation10], 1
    %543 = vsyncpa %s542, 1

</llo_original>
